<compile_context>
chip_gen: v5e
topology: v5e:2x2
jax: 0.10.0
libtpu: 0.0.40
codegen_flags: <defaults>
</compile_context>

<pallas_src>
import functools

import numpy as np
import jax
import jax.numpy as jnp
from jax import lax
from jax.experimental import pallas as pl
from jax.experimental.pallas import tpu as pltpu

LAMBDA_COORD = 5.0
LAMBDA_NOOBJ = 0.5


def _softplus(x):
    # numerically stable softplus (never produces inf for finite x)
    return jnp.maximum(x, 0.0) + jnp.log(1.0 + jnp.exp(-jnp.abs(x)))


def _yolo_loss_kernel(pred_ref, tgt_ref, out_ref, *, H, W, num_classes, B, b_blk):
    f32, bf16 = jnp.float32, jnp.bfloat16
    S = H * W

    # natural-layout block -> channel-major inside the kernel (cells on the lane axis)
    pred_t = jnp.transpose(pred_ref[...], (0, 2, 1))           # [Bb, C, S]
    pred_f = pred_t.astype(f32)                                # elementwise / EUP path
    pred_b = pred_t.astype(bf16)                               # MXU gather path

    tgt = tgt_ref[...].astype(f32)                             # [Bb, 6, T]
    Bb = pred_f.shape[0]
    T = tgt.shape[2]

    cls_id = tgt[:, 0, :]                                      # [Bb, T] lane-dense rows
    cx, cy = tgt[:, 1, :], tgt[:, 2, :]
    w, h = tgt[:, 3, :], tgt[:, 4, :]
    valid = tgt[:, 5, :]

    gx_f, gy_f = cx * W, cy * H
    gx = gx_f.astype(jnp.int32)                                # trunc toward zero == python int()
    gy = gy_f.astype(jnp.int32)
    gi = gy * W + gx                                           # [Bb, T]

    # loss path only checks the upper bound ("if gx >= W or gy >= H: continue")
    in_hi = jnp.logical_and(gx < W, gy < H)
    # obj-mask path checks both bounds ("if 0 <= gx < W and 0 <= gy < H")
    in_full = jnp.logical_and(in_hi, jnp.logical_and(gx >= 0, gy >= 0))
    # TODO(synk): negative cx/cy would use python negative indexing in torch; not replicated.

    # responsible-cell one-hot, built directly in bf16 (0/1 exact in bf16)
    cell_iota = lax.broadcasted_iota(jnp.int32, (Bb, S, T), 1)
    onehot = (cell_iota == gi[:, None, :]).astype(bf16)        # [Bb, S, T]

    # gather the responsible cell's prediction per target: bf16 MXU matmul, f32 acc
    gathered = jnp.einsum('bcs,bst->bct', pred_b, onehot,
                          preferred_element_type=f32)          # [Bb, C, T]

    # --- xy loss: MSE(sigmoid(pred[:2]), (tx, ty)), mean over the 2 coords ---
    tx, ty = gx_f - gx.astype(f32), gy_f - gy.astype(f32)
    px = jax.nn.sigmoid(gathered[:, 0, :])
    py = jax.nn.sigmoid(gathered[:, 1, :])
    xy_loss = 0.5 * ((px - tx) ** 2 + (py - ty) ** 2)          # [Bb, T]

    # --- wh loss: MSE(pred[2:4], (log(w*W+eps), log(h*H+eps))) ---
    tw, th = jnp.log(w * W + 1e-16), jnp.log(h * H + 1e-16)
    wh_loss = 0.5 * ((gathered[:, 2, :] - tw) ** 2 + (gathered[:, 3, :] - th) ** 2)

    # --- objectness BCE vs 1.0: -log(sigmoid(z)) == softplus(-z), torch clamps at 100 ---
    conf_loss = jnp.minimum(_softplus(-gathered[:, 4, :]), 100.0)

    # --- class cross-entropy ---
    logits = gathered[:, 5:5 + num_classes, :]                 # [Bb, NC, T]
    cls_iota = lax.broadcasted_iota(jnp.int32, (Bb, num_classes, T), 1)
    cls_onehot = (cls_iota == cls_id.astype(jnp.int32)[:, None, :]).astype(f32)
    mx = jnp.max(logits, axis=1, keepdims=True)
    lse = mx + jnp.log(jnp.sum(jnp.exp(logits - mx), axis=1, keepdims=True))
    picked = jnp.sum(cls_onehot * logits, axis=1, keepdims=True)
    cls_loss = (lse - picked)[:, 0, :]                         # [Bb, T]

    loss_mask = valid * in_hi.astype(f32)                      # [Bb, T]
    per_target = LAMBDA_COORD * (xy_loss + wh_loss) + conf_loss + cls_loss
    obj_loss_img = jnp.sum(per_target * loss_mask, axis=1, keepdims=True)   # [Bb, 1]
    n_obj_img = jnp.sum(loss_mask, axis=1, keepdims=True)                   # [Bb, 1]

    # --- no-object BCE: scatter valid in-bounds targets to cells with an MXU
    #     contraction (no S*T VPU multiply, no XLU reduce, no third S*T temp) ---
    mask_full = (valid * in_full.astype(f32)).astype(bf16)     # [Bb, T]
    cell_obj = jnp.einsum('bot,bst->bos', mask_full[:, None, :], onehot,
                          preferred_element_type=f32)[:, 0, :]  # [Bb, S]
    noobj_mask = (cell_obj <= 0.0).astype(f32)
    noobj_cnt = jnp.sum(noobj_mask, axis=1, keepdims=True)     # [Bb, 1]
    # -log(1 - sigmoid(z)) == softplus(z); lane-dense over all S cells
    bce_all = jnp.minimum(_softplus(pred_f[:, 4, :]), 100.0)   # [Bb, S]
    noobj_sum = jnp.sum(noobj_mask * bce_all, axis=1, keepdims=True)
    noobj_img = jnp.where(noobj_cnt > 0.0,
                          noobj_sum / jnp.maximum(noobj_cnt, 1.0), 0.0)

    per_image = obj_loss_img + LAMBDA_NOOBJ * noobj_img        # [Bb, 1]

    # ragged batch tail: rows past the real batch size hold undefined data; jnp.where
    # (not a multiply) guarantees their NaN/inf never reach the block partials.
    b_idx = pl.program_id(0) * b_blk + lax.broadcasted_iota(jnp.int32, (Bb, 1), 0)
    batch_ok = b_idx < B
    block_loss = jnp.sum(jnp.where(batch_ok, per_image, 0.0))
    block_nobj = jnp.sum(jnp.where(batch_ok, n_obj_img, 0.0))

    # lane-dense per-block partials: [0,0,0] = loss sum, [0,0,1] = num objects
    sub = lax.broadcasted_iota(jnp.int32, (1, 8, 128), 1)
    lane = lax.broadcasted_iota(jnp.int32, (1, 8, 128), 2)
    out_ref[...] = jnp.where((sub == 0) & (lane == 0), block_loss,
                             jnp.where((sub == 0) & (lane == 1), block_nobj, 0.0))


def _round_up(x, m):
    return -(-int(x) // int(m)) * int(m)


def _vmem_capacity_bytes():
    """Per-TensorCore VMEM, generation aware (v5e/v6e 128 MiB, v7x 64 MiB)."""
    try:
        return int(pltpu.get_tpu_info().vmem_capacity_bytes)
    except Exception:
        return 64 << 20   # conservative fallback (v7x per-TC VMEM)


def _per_image_vmem(S, C, T, num_classes, pred_bytes):
    """Honest per-image estimate: double-buffered input blocks + live kernel temporaries."""
    S8, S128 = _round_up(S, 8), _round_up(S, 128)
    T128 = _round_up(T, 128)
    C8, C128 = _round_up(C, 8), _round_up(C, 128)
    NC8 = _round_up(max(num_classes, 1), 8)
    # natural-layout prediction block pads C to the 128-lane tile; targets pad 6 -> 8 sublanes
    per_in = 2 * (S8 * C128 * pred_bytes + 8 * T128 * 4)
    per_tmp = (S8 * T128 * (4 + 2)                  # cell iota (i32) + one-hot (bf16)
               + C8 * S128 * (pred_bytes + 4 + 2)   # transposed pred + f32 / bf16 copies
               + (C8 + 2 * NC8) * T128 * 4          # gathered + class iota / one-hot
               + 24 * T128 * 4                      # per-target [Bb, T] rows
               + 8 * S128 * 4)                      # per-cell [Bb, S] rows
    return per_in + per_tmp


def yolo_loss(predictions, targets_dense, grid_size, num_classes, b_blk=None):
    # accept bf16 predictions at the boundary; anything else is promoted to f32.
    if predictions.dtype != jnp.bfloat16:
        predictions = predictions.astype(jnp.float32)
    targets_dense = targets_dense.astype(jnp.float32)

    B, S, C = predictions.shape
    H, W = grid_size
    assert S == H * W and C == 5 + num_classes
    T = targets_dense.shape[1]

    # targets are tiny (~KB): one small transpose buys lane-dense per-target math.
    # predictions stay in natural [B, S, C] layout -> no extra HBM round trip.
    tgt_t = jnp.transpose(targets_dense, (0, 2, 1))             # [B, 6, T]

    pred_bytes = predictions.dtype.itemsize
    per_img = _per_image_vmem(S, C, T, num_classes, pred_bytes)
    vmem_cap = _vmem_capacity_bytes()
    vmem_limit = int(min(max(32 << 20, (vmem_cap * 3) // 4), 96 << 20))
    headroom = 6 << 20                                          # compiler-internal scratch

    if b_blk is None:
        b_blk = max(1, (vmem_limit - headroom) // per_img)
    b_blk = int(max(1, min(b_blk, B, 128)))

    # at least two grid blocks (even when possible) so a v7x megacore can shard the
    # "parallel" batch axis; costs ~0.35us extra per-step overhead on single-TC chips.
    num_blocks = -(-B // b_blk)
    if B >= 2 and num_blocks < 2:
        num_blocks = 2
    if num_blocks >= 2 and num_blocks % 2:
        num_blocks += 1
    b_blk = -(-B // num_blocks)
    num_blocks = -(-B // b_blk)

    vmem_needed = b_blk * per_img + headroom
    if vmem_needed > vmem_limit:
        vmem_limit = int(min(vmem_needed, (vmem_cap * 7) // 8))

    kernel = functools.partial(_yolo_loss_kernel, H=H, W=W, num_classes=num_classes,
                               B=B, b_blk=b_blk)
    partials = pl.pallas_call(
        kernel,
        out_shape=jax.ShapeDtypeStruct((num_blocks, 8, 128), jnp.float32),
        grid_spec=pltpu.PrefetchScalarGridSpec(
            num_scalar_prefetch=0,
            grid=(num_blocks,),
            in_specs=[
                pl.BlockSpec((b_blk, S, C), lambda g: (g, 0, 0)),   # natural layout
                pl.BlockSpec((b_blk, 6, T), lambda g: (g, 0, 0)),
            ],
            out_specs=pl.BlockSpec((1, 8, 128), lambda g: (g, 0, 0)),
        ),
        compiler_params=pltpu.CompilerParams(
            dimension_semantics=("parallel",),
            vmem_limit_bytes=vmem_limit),
    )(predictions, tgt_t)

    total_loss = jnp.sum(partials[:, 0, 0])
    n_obj = jnp.sum(partials[:, 0, 1])
    return total_loss / jnp.maximum(n_obj, 1.0)


def yolo_loss_ref(predictions, targets_list, grid_size, num_classes):
    """Pure numpy mirror of the PyTorch forward (for verification only)."""
    lambda_coord, lambda_noobj = 5.0, 0.5
    predictions = np.asarray(predictions, dtype=np.float32)
    H, W = grid_size
    B, S, _ = predictions.shape
    sigm = lambda x: 1.0 / (1.0 + np.exp(-x))
    bce1 = lambda p: min(-np.log(p), 100.0) if p > 0 else 100.0
    def bce0(p):
        q = 1.0 - p
        return min(-np.log(q), 100.0) if q > 0 else 100.0

    total_loss = 0.0
    num_objects = 0
    for b in range(B):
        pred = predictions[b]
        target = targets_list[b]
        if len(target) == 0:
            conf = sigm(pred[:, 4])
            total_loss += lambda_noobj * np.mean([bce0(p) for p in conf])
            continue
        batch_loss = 0.0
        for t in target:
            cls_id, cx, cy, w, h = [float(v) for v in t]
            gx, gy = int(cx * W), int(cy * H)
            if gx >= W or gy >= H:
                continue
            gi = gy * W + gx
            tx, ty = cx * W - gx, cy * H - gy
            pxy = sigm(pred[gi, :2])
            xy_loss = np.mean((pxy - np.array([tx, ty], np.float32)) ** 2)
            tw, th = np.log(w * W + 1e-16), np.log(h * H + 1e-16)
            wh_loss = np.mean((pred[gi, 2:4] - np.array([tw, th], np.float32)) ** 2)
            conf_loss = bce1(sigm(pred[gi, 4]))
            logits = pred[gi, 5:].astype(np.float64)
            lse = np.log(np.sum(np.exp(logits - logits.max()))) + logits.max()
            cls_loss = lse - logits[int(cls_id)]
            batch_loss += lambda_coord * (xy_loss + wh_loss) + conf_loss + cls_loss
            num_objects += 1
        obj_mask = np.zeros(S, dtype=bool)
        for t in target:
            gx, gy = int(float(t[1]) * W), int(float(t[2]) * H)
            if 0 <= gx < W and 0 <= gy < H:
                obj_mask[gy * W + gx] = True
        noobj_mask = ~obj_mask
        if noobj_mask.any():
            conf = sigm(pred[noobj_mask, 4])
            batch_loss += lambda_noobj * np.mean([bce0(p) for p in conf])
        total_loss += batch_loss
    return total_loss / max(num_objects, 1)


if __name__ == "__main__":
    num_classes = 3
    H = W = 4
    B, S, C, T = 3, H * W, 5 + num_classes, 8

    key = jax.random.PRNGKey(0)
    predictions = jax.random.normal(key, (B, S, C), dtype=jnp.float32)

    # image 0: three targets; image 1: no targets (empty-target path);
    # image 2: two targets, one out-of-bounds (skip path).  The auto block picker
    # forces two grid blocks (B=3, b_blk=2), so the second block exercises the
    # in-kernel ragged-batch-tail mask.
    targets_list = [
        np.array([[1.0, 0.30, 0.60, 0.20, 0.40],
                  [0.0, 0.90, 0.10, 0.50, 0.30],
                  [2.0, 0.55, 0.55, 0.15, 0.25]], dtype=np.float32),
        np.zeros((0, 5), dtype=np.float32),
        np.array([[2.0, 0.10, 0.20, 0.30, 0.40],
                  [1.0, 1.20, 0.50, 0.20, 0.20]], dtype=np.float32),
    ]
    targets_dense = np.zeros((B, T, 6), dtype=np.float32)
    for b, tl in enumerate(targets_list):
        n = len(tl)
        targets_dense[b, :n, :5] = tl
        targets_dense[b, :n, 5] = 1.0

    loss = yolo_loss(predictions, jnp.asarray(targets_dense), (H, W), num_classes)
    loss = jax.block_until_ready(loss)

    ref = yolo_loss_ref(np.asarray(predictions), targets_list, (H, W), num_classes)
    assert np.isfinite(float(loss))
    # tolerance relaxed vs the f32 torch reference: the responsible-cell gather feeds
    # bf16-rounded predictions to the MXU (exact selection, bf16-rounded values).
    np.testing.assert_allclose(float(loss), float(ref), rtol=2e-2, atol=1e-2)
    print("KERNEL_OK")
</pallas_src>

<mosaic_0001>
module attributes {stable_mosaic.version = 11 : i64} {
  func.func @_yolo_loss_kernel(%arg0: i32, %arg1: memref<2x16x8xf32, #tpu.memory_space<vmem>>, %arg2: memref<2x6x8xf32, #tpu.memory_space<vmem>>, %arg3: memref<1x8x128xf32, #tpu.memory_space<vmem>>) attributes {dimension_semantics = [#tpu.dimension_semantics<parallel>], iteration_bounds = array<i64: 2>, scalar_prefetch = 0 : i64, scratch_operands = 0 : i64, tpu.core_type = #tpu.core_type<tc>, window_params = [{transform_indices = @transform_0, window_bounds = array<i64: 2, 16, 8>}, {transform_indices = @transform_1, window_bounds = array<i64: 2, 6, 8>}, {transform_indices = @transform_2, window_bounds = array<i64: 1, 8, 128>}]} {
    %c0 = arith.constant 0 : index
    %c0_0 = arith.constant 0 : index
    %c0_1 = arith.constant 0 : index
    %0 = vector.load %arg1[%c0, %c0_0, %c0_1] : memref<2x16x8xf32, #tpu.memory_space<vmem>>, vector<2x16x8xf32>
    %1 = tpu.transpose %0, [0, 2, 1] : vector<2x16x8xf32> -> vector<2x8x16xf32>
    %2 = arith.truncf %1 : vector<2x8x16xf32> to vector<2x8x16xbf16>
    %c0_2 = arith.constant 0 : index
    %c0_3 = arith.constant 0 : index
    %c0_4 = arith.constant 0 : index
    %3 = vector.load %arg2[%c0_2, %c0_3, %c0_4] : memref<2x6x8xf32, #tpu.memory_space<vmem>>, vector<2x6x8xf32>
    %4 = vector.extract_strided_slice %3 {offsets = [0, 0, 0], sizes = [2, 1, 8], strides = [1, 1, 1]} : vector<2x6x8xf32> to vector<2x1x8xf32>
    %5 = vector.shape_cast %4 : vector<2x1x8xf32> to vector<2x8xf32>
    %6 = vector.extract_strided_slice %3 {offsets = [0, 1, 0], sizes = [2, 1, 8], strides = [1, 1, 1]} : vector<2x6x8xf32> to vector<2x1x8xf32>
    %7 = vector.shape_cast %6 : vector<2x1x8xf32> to vector<2x8xf32>
    %8 = vector.extract_strided_slice %3 {offsets = [0, 2, 0], sizes = [2, 1, 8], strides = [1, 1, 1]} : vector<2x6x8xf32> to vector<2x1x8xf32>
    %9 = vector.shape_cast %8 : vector<2x1x8xf32> to vector<2x8xf32>
    %10 = vector.extract_strided_slice %3 {offsets = [0, 3, 0], sizes = [2, 1, 8], strides = [1, 1, 1]} : vector<2x6x8xf32> to vector<2x1x8xf32>
    %11 = vector.shape_cast %10 : vector<2x1x8xf32> to vector<2x8xf32>
    %12 = vector.extract_strided_slice %3 {offsets = [0, 4, 0], sizes = [2, 1, 8], strides = [1, 1, 1]} : vector<2x6x8xf32> to vector<2x1x8xf32>
    %13 = vector.shape_cast %12 : vector<2x1x8xf32> to vector<2x8xf32>
    %14 = vector.extract_strided_slice %3 {offsets = [0, 5, 0], sizes = [2, 1, 8], strides = [1, 1, 1]} : vector<2x6x8xf32> to vector<2x1x8xf32>
    %15 = vector.shape_cast %14 : vector<2x1x8xf32> to vector<2x8xf32>
    %cst = arith.constant 4.000000e+00 : f32
    %16 = vector.broadcast %cst : f32 to vector<2x8xf32>
    %17 = arith.mulf %7, %16 : vector<2x8xf32>
    %cst_5 = arith.constant 4.000000e+00 : f32
    %18 = vector.broadcast %cst_5 : f32 to vector<2x8xf32>
    %19 = arith.mulf %9, %18 : vector<2x8xf32>
    %20 = arith.fptosi %17 : vector<2x8xf32> to vector<2x8xi32>
    %21 = arith.fptosi %19 : vector<2x8xf32> to vector<2x8xi32>
    %c4_i32 = arith.constant 4 : i32
    %22 = vector.broadcast %c4_i32 : i32 to vector<2x8xi32>
    %23 = arith.muli %21, %22 : vector<2x8xi32>
    %24 = arith.addi %23, %20 : vector<2x8xi32>
    %c4_i32_6 = arith.constant 4 : i32
    %25 = vector.broadcast %c4_i32_6 : i32 to vector<2x8xi32>
    %26 = arith.cmpi slt, %20, %25 : vector<2x8xi32>
    %c4_i32_7 = arith.constant 4 : i32
    %27 = vector.broadcast %c4_i32_7 : i32 to vector<2x8xi32>
    %28 = arith.cmpi slt, %21, %27 : vector<2x8xi32>
    %29 = arith.andi %26, %28 : vector<2x8xi1>
    %c0_i32 = arith.constant 0 : i32
    %30 = vector.broadcast %c0_i32 : i32 to vector<2x8xi32>
    %31 = arith.cmpi sge, %20, %30 : vector<2x8xi32>
    %c0_i32_8 = arith.constant 0 : i32
    %32 = vector.broadcast %c0_i32_8 : i32 to vector<2x8xi32>
    %33 = arith.cmpi sge, %21, %32 : vector<2x8xi32>
    %34 = arith.andi %31, %33 : vector<2x8xi1>
    %35 = arith.andi %29, %34 : vector<2x8xi1>
    %36 = tpu.iota {dimensions = array<i32: 1>} : vector<2x16x8xi32>
    %37 = vector.shape_cast %24 : vector<2x8xi32> to vector<2x1x8xi32>
    %38 = vector.broadcast %37 : vector<2x1x8xi32> to vector<2x16x8xi32>
    %39 = arith.cmpi eq, %36, %38 : vector<2x16x8xi32>
    %40 = arith.extui %39 : vector<2x16x8xi1> to vector<2x16x8xi32>
    %41 = arith.sitofp %40 : vector<2x16x8xi32> to vector<2x16x8xf32>
    %42 = arith.truncf %41 : vector<2x16x8xf32> to vector<2x16x8xbf16>
    "tpu.trace_start"() <{level = 10 : i32, message = "bcs,bst->bct"}> : () -> ()
    %cst_9 = arith.constant dense<0.000000e+00> : vector<2x8x8xf32>
    %43 = tpu.matmul %2, %42, %cst_9 {dimension_numbers = #tpu.dot_dimension_numbers<[2], [1], [1], [2], [0, 0, 0, 1, 1, 2], [0], [0]>} : vector<2x8x16xbf16>, vector<2x16x8xbf16>, vector<2x8x8xf32> -> vector<2x8x8xf32>
    "tpu.trace_stop"() : () -> ()
    %44 = arith.sitofp %20 : vector<2x8xi32> to vector<2x8xf32>
    %45 = arith.subf %17, %44 : vector<2x8xf32>
    %46 = arith.sitofp %21 : vector<2x8xi32> to vector<2x8xf32>
    %47 = arith.subf %19, %46 : vector<2x8xf32>
    %48 = vector.extract_strided_slice %43 {offsets = [0, 0, 0], sizes = [2, 1, 8], strides = [1, 1, 1]} : vector<2x8x8xf32> to vector<2x1x8xf32>
    %49 = vector.shape_cast %48 : vector<2x1x8xf32> to vector<2x8xf32>
    %50 = arith.negf %49 : vector<2x8xf32>
    %51 = math.exp %50 : vector<2x8xf32>
    %cst_10 = arith.constant 1.000000e+00 : f32
    %52 = vector.broadcast %cst_10 : f32 to vector<2x8xf32>
    %53 = arith.addf %52, %51 : vector<2x8xf32>
    %54 = arith.divf %52, %53 : vector<2x8xf32>
    %55 = vector.extract_strided_slice %43 {offsets = [0, 1, 0], sizes = [2, 1, 8], strides = [1, 1, 1]} : vector<2x8x8xf32> to vector<2x1x8xf32>
    %56 = vector.shape_cast %55 : vector<2x1x8xf32> to vector<2x8xf32>
    %57 = arith.negf %56 : vector<2x8xf32>
    %58 = math.exp %57 : vector<2x8xf32>
    %cst_11 = arith.constant 1.000000e+00 : f32
    %59 = vector.broadcast %cst_11 : f32 to vector<2x8xf32>
    %60 = arith.addf %59, %58 : vector<2x8xf32>
    %61 = arith.divf %59, %60 : vector<2x8xf32>
    %62 = arith.subf %54, %45 : vector<2x8xf32>
    %63 = arith.mulf %62, %62 : vector<2x8xf32>
    %64 = arith.subf %61, %47 : vector<2x8xf32>
    %65 = arith.mulf %64, %64 : vector<2x8xf32>
    %66 = arith.addf %63, %65 : vector<2x8xf32>
    %cst_12 = arith.constant 5.000000e-01 : f32
    %67 = vector.broadcast %cst_12 : f32 to vector<2x8xf32>
    %68 = arith.mulf %67, %66 : vector<2x8xf32>
    %cst_13 = arith.constant 4.000000e+00 : f32
    %69 = vector.broadcast %cst_13 : f32 to vector<2x8xf32>
    %70 = arith.mulf %11, %69 : vector<2x8xf32>
    %cst_14 = arith.constant 1.000000e-16 : f32
    %71 = vector.broadcast %cst_14 : f32 to vector<2x8xf32>
    %72 = arith.addf %70, %71 : vector<2x8xf32>
    %73 = math.log %72 : vector<2x8xf32>
    %cst_15 = arith.constant 4.000000e+00 : f32
    %74 = vector.broadcast %cst_15 : f32 to vector<2x8xf32>
    %75 = arith.mulf %13, %74 : vector<2x8xf32>
    %cst_16 = arith.constant 1.000000e-16 : f32
    %76 = vector.broadcast %cst_16 : f32 to vector<2x8xf32>
    %77 = arith.addf %75, %76 : vector<2x8xf32>
    %78 = math.log %77 : vector<2x8xf32>
    %79 = vector.extract_strided_slice %43 {offsets = [0, 2, 0], sizes = [2, 1, 8], strides = [1, 1, 1]} : vector<2x8x8xf32> to vector<2x1x8xf32>
    %80 = vector.shape_cast %79 : vector<2x1x8xf32> to vector<2x8xf32>
    %81 = arith.subf %80, %73 : vector<2x8xf32>
    %82 = arith.mulf %81, %81 : vector<2x8xf32>
    %83 = vector.extract_strided_slice %43 {offsets = [0, 3, 0], sizes = [2, 1, 8], strides = [1, 1, 1]} : vector<2x8x8xf32> to vector<2x1x8xf32>
    %84 = vector.shape_cast %83 : vector<2x1x8xf32> to vector<2x8xf32>
    %85 = arith.subf %84, %78 : vector<2x8xf32>
    %86 = arith.mulf %85, %85 : vector<2x8xf32>
    %87 = arith.addf %82, %86 : vector<2x8xf32>
    %cst_17 = arith.constant 5.000000e-01 : f32
    %88 = vector.broadcast %cst_17 : f32 to vector<2x8xf32>
    %89 = arith.mulf %88, %87 : vector<2x8xf32>
    %90 = vector.extract_strided_slice %43 {offsets = [0, 4, 0], sizes = [2, 1, 8], strides = [1, 1, 1]} : vector<2x8x8xf32> to vector<2x1x8xf32>
    %91 = vector.shape_cast %90 : vector<2x1x8xf32> to vector<2x8xf32>
    %cst_18 = arith.constant 0.000000e+00 : f32
    %92 = vector.broadcast %cst_18 : f32 to vector<2x8xf32>
    %93 = arith.subf %92, %91 : vector<2x8xf32>
    %cst_19 = arith.constant 0.000000e+00 : f32
    %94 = vector.broadcast %cst_19 : f32 to vector<2x8xf32>
    %95 = arith.maximumf %93, %94 : vector<2x8xf32>
    %96 = math.absf %93 : vector<2x8xf32>
    %cst_20 = arith.constant 0.000000e+00 : f32
    %97 = vector.broadcast %cst_20 : f32 to vector<2x8xf32>
    %98 = arith.subf %97, %96 : vector<2x8xf32>
    %99 = math.exp %98 : vector<2x8xf32>
    %cst_21 = arith.constant 1.000000e+00 : f32
    %100 = vector.broadcast %cst_21 : f32 to vector<2x8xf32>
    %101 = arith.addf %100, %99 : vector<2x8xf32>
    %102 = math.log %101 : vector<2x8xf32>
    %103 = arith.addf %95, %102 : vector<2x8xf32>
    %cst_22 = arith.constant 1.000000e+02 : f32
    %104 = vector.broadcast %cst_22 : f32 to vector<2x8xf32>
    %105 = arith.minimumf %103, %104 : vector<2x8xf32>
    %106 = vector.extract_strided_slice %43 {offsets = [0, 5, 0], sizes = [2, 3, 8], strides = [1, 1, 1]} : vector<2x8x8xf32> to vector<2x3x8xf32>
    %107 = tpu.iota {dimensions = array<i32: 1>} : vector<2x3x8xi32>
    %108 = arith.fptosi %5 : vector<2x8xf32> to vector<2x8xi32>
    %109 = vector.shape_cast %108 : vector<2x8xi32> to vector<2x1x8xi32>
    %110 = vector.broadcast %109 : vector<2x1x8xi32> to vector<2x3x8xi32>
    %111 = arith.cmpi eq, %107, %110 : vector<2x3x8xi32>
    %112 = arith.extui %111 : vector<2x3x8xi1> to vector<2x3x8xi32>
    %113 = arith.sitofp %112 : vector<2x3x8xi32> to vector<2x3x8xf32>
    %cst_23 = arith.constant dense<0xFF800000> : vector<2x8xf32>
    %114 = vector.multi_reduction <maximumf>, %106, %cst_23 [1] : vector<2x3x8xf32> to vector<2x8xf32>
    %115 = vector.shape_cast %114 : vector<2x8xf32> to vector<2x1x8xf32>
    %116 = vector.broadcast %115 : vector<2x1x8xf32> to vector<2x3x8xf32>
    %117 = arith.subf %106, %116 : vector<2x3x8xf32>
    %118 = math.exp %117 : vector<2x3x8xf32>
    %cst_24 = arith.constant dense<0.000000e+00> : vector<2x8xf32>
    %119 = vector.multi_reduction <add>, %118, %cst_24 [1] : vector<2x3x8xf32> to vector<2x8xf32>
    %120 = vector.shape_cast %119 : vector<2x8xf32> to vector<2x1x8xf32>
    %121 = math.log %120 : vector<2x1x8xf32>
    %122 = arith.addf %115, %121 : vector<2x1x8xf32>
    %123 = arith.mulf %113, %106 : vector<2x3x8xf32>
    %cst_25 = arith.constant dense<0.000000e+00> : vector<2x8xf32>
    %124 = vector.multi_reduction <add>, %123, %cst_25 [1] : vector<2x3x8xf32> to vector<2x8xf32>
    %125 = vector.shape_cast %124 : vector<2x8xf32> to vector<2x1x8xf32>
    %126 = arith.subf %122, %125 : vector<2x1x8xf32>
    %127 = vector.shape_cast %126 : vector<2x1x8xf32> to vector<2x8xf32>
    %128 = arith.extui %29 : vector<2x8xi1> to vector<2x8xi32>
    %129 = arith.sitofp %128 : vector<2x8xi32> to vector<2x8xf32>
    %130 = arith.mulf %15, %129 : vector<2x8xf32>
    %131 = arith.addf %68, %89 : vector<2x8xf32>
    %cst_26 = arith.constant 5.000000e+00 : f32
    %132 = vector.broadcast %cst_26 : f32 to vector<2x8xf32>
    %133 = arith.mulf %132, %131 : vector<2x8xf32>
    %134 = arith.addf %133, %105 : vector<2x8xf32>
    %135 = arith.addf %134, %127 : vector<2x8xf32>
    %136 = arith.mulf %135, %130 : vector<2x8xf32>
    %cst_27 = arith.constant dense<0.000000e+00> : vector<2xf32>
    %137 = vector.multi_reduction <add>, %136, %cst_27 [1] : vector<2x8xf32> to vector<2xf32>
    %138 = vector.shape_cast %137 : vector<2xf32> to vector<2x1xf32>
    %cst_28 = arith.constant dense<0.000000e+00> : vector<2xf32>
    %139 = vector.multi_reduction <add>, %130, %cst_28 [1] : vector<2x8xf32> to vector<2xf32>
    %140 = vector.shape_cast %139 : vector<2xf32> to vector<2x1xf32>
    %141 = arith.extui %35 : vector<2x8xi1> to vector<2x8xi32>
    %142 = arith.sitofp %141 : vector<2x8xi32> to vector<2x8xf32>
    %143 = arith.mulf %15, %142 : vector<2x8xf32>
    %144 = arith.truncf %143 : vector<2x8xf32> to vector<2x8xbf16>
    %145 = vector.shape_cast %144 : vector<2x8xbf16> to vector<2x1x8xbf16>
    "tpu.trace_start"() <{level = 10 : i32, message = "bot,bst->bos"}> : () -> ()
    %cst_29 = arith.constant dense<0.000000e+00> : vector<2x1x16xf32>
    %146 = tpu.matmul %145, %42, %cst_29 {dimension_numbers = #tpu.dot_dimension_numbers<[2], [2], [1], [1], [0, 0, 0, 1, 1, 1], [0], [0]>} : vector<2x1x8xbf16>, vector<2x16x8xbf16>, vector<2x1x16xf32> -> vector<2x1x16xf32>
    "tpu.trace_stop"() : () -> ()
    %147 = vector.shape_cast %146 : vector<2x1x16xf32> to vector<2x16xf32>
    %cst_30 = arith.constant 0.000000e+00 : f32
    %148 = vector.broadcast %cst_30 : f32 to vector<2x16xf32>
    %149 = arith.cmpf ole, %147, %148 : vector<2x16xf32>
    %150 = arith.extui %149 : vector<2x16xi1> to vector<2x16xi32>
    %151 = arith.sitofp %150 : vector<2x16xi32> to vector<2x16xf32>
    %cst_31 = arith.constant dense<0.000000e+00> : vector<2xf32>
    %152 = vector.multi_reduction <add>, %151, %cst_31 [1] : vector<2x16xf32> to vector<2xf32>
    %153 = vector.shape_cast %152 : vector<2xf32> to vector<2x1xf32>
    %154 = vector.extract_strided_slice %1 {offsets = [0, 4, 0], sizes = [2, 1, 16], strides = [1, 1, 1]} : vector<2x8x16xf32> to vector<2x1x16xf32>
    %155 = vector.shape_cast %154 : vector<2x1x16xf32> to vector<2x16xf32>
    %cst_32 = arith.constant 0.000000e+00 : f32
    %156 = vector.broadcast %cst_32 : f32 to vector<2x16xf32>
    %157 = arith.maximumf %155, %156 : vector<2x16xf32>
    %158 = math.absf %155 : vector<2x16xf32>
    %cst_33 = arith.constant 0.000000e+00 : f32
    %159 = vector.broadcast %cst_33 : f32 to vector<2x16xf32>
    %160 = arith.subf %159, %158 : vector<2x16xf32>
    %161 = math.exp %160 : vector<2x16xf32>
    %cst_34 = arith.constant 1.000000e+00 : f32
    %162 = vector.broadcast %cst_34 : f32 to vector<2x16xf32>
    %163 = arith.addf %162, %161 : vector<2x16xf32>
    %164 = math.log %163 : vector<2x16xf32>
    %165 = arith.addf %157, %164 : vector<2x16xf32>
    %cst_35 = arith.constant 1.000000e+02 : f32
    %166 = vector.broadcast %cst_35 : f32 to vector<2x16xf32>
    %167 = arith.minimumf %165, %166 : vector<2x16xf32>
    %168 = arith.mulf %151, %167 : vector<2x16xf32>
    %cst_36 = arith.constant dense<0.000000e+00> : vector<2xf32>
    %169 = vector.multi_reduction <add>, %168, %cst_36 [1] : vector<2x16xf32> to vector<2xf32>
    %170 = vector.shape_cast %169 : vector<2xf32> to vector<2x1xf32>
    %cst_37 = arith.constant 0.000000e+00 : f32
    %171 = vector.broadcast %cst_37 : f32 to vector<2x1xf32>
    %172 = arith.cmpf ogt, %153, %171 : vector<2x1xf32>
    %cst_38 = arith.constant 1.000000e+00 : f32
    %173 = vector.broadcast %cst_38 : f32 to vector<2x1xf32>
    %174 = arith.maximumf %153, %173 : vector<2x1xf32>
    %175 = arith.divf %170, %174 : vector<2x1xf32>
    %cst_39 = arith.constant 0.000000e+00 : f32
    %176 = vector.broadcast %cst_39 : f32 to vector<2x1xf32>
    %177 = arith.select %172, %175, %176 : vector<2x1xi1>, vector<2x1xf32>
    %cst_40 = arith.constant 5.000000e-01 : f32
    %178 = vector.broadcast %cst_40 : f32 to vector<2x1xf32>
    %179 = arith.mulf %178, %177 : vector<2x1xf32>
    %180 = arith.addf %138, %179 : vector<2x1xf32>
    %c2_i32 = arith.constant 2 : i32
    %181 = arith.muli %arg0, %c2_i32 : i32
    %182 = tpu.iota {dimensions = array<i32: 0>} : vector<2x1xi32>
    %183 = vector.broadcast %181 : i32 to vector<2x1xi32>
    %184 = arith.addi %183, %182 : vector<2x1xi32>
    %c3_i32 = arith.constant 3 : i32
    %185 = vector.broadcast %c3_i32 : i32 to vector<2x1xi32>
    %186 = arith.cmpi slt, %184, %185 : vector<2x1xi32>
    %cst_41 = arith.constant 0.000000e+00 : f32
    %187 = vector.broadcast %cst_41 : f32 to vector<2x1xf32>
    %188 = arith.select %186, %180, %187 : vector<2x1xi1>, vector<2x1xf32>
    %189 = vector.shape_cast %188 : vector<2x1xf32> to vector<1x2x1xf32>
    %cst_42 = arith.constant dense<0.000000e+00> : vector<1xf32>
    %190 = vector.multi_reduction <add>, %189, %cst_42 [1, 2] : vector<1x2x1xf32> to vector<1xf32>
    %191 = vector.shape_cast %190 : vector<1xf32> to vector<1x1x1xf32>
    %192 = vector.extract %191[0, 0, 0] : f32 from vector<1x1x1xf32>
    %cst_43 = arith.constant 0.000000e+00 : f32
    %193 = vector.broadcast %cst_43 : f32 to vector<2x1xf32>
    %194 = arith.select %186, %140, %193 : vector<2x1xi1>, vector<2x1xf32>
    %195 = vector.shape_cast %194 : vector<2x1xf32> to vector<1x2x1xf32>
    %cst_44 = arith.constant dense<0.000000e+00> : vector<1xf32>
    %196 = vector.multi_reduction <add>, %195, %cst_44 [1, 2] : vector<1x2x1xf32> to vector<1xf32>
    %197 = vector.shape_cast %196 : vector<1xf32> to vector<1x1x1xf32>
    %198 = vector.extract %197[0, 0, 0] : f32 from vector<1x1x1xf32>
    %199 = tpu.iota {dimensions = array<i32: 1>} : vector<1x8x128xi32>
    %200 = tpu.iota {dimensions = array<i32: 2>} : vector<1x8x128xi32>
    %c0_i32_45 = arith.constant 0 : i32
    %201 = vector.broadcast %c0_i32_45 : i32 to vector<1x8x128xi32>
    %202 = arith.cmpi eq, %199, %201 : vector<1x8x128xi32>
    %c0_i32_46 = arith.constant 0 : i32
    %203 = vector.broadcast %c0_i32_46 : i32 to vector<1x8x128xi32>
    %204 = arith.cmpi eq, %200, %203 : vector<1x8x128xi32>
    %205 = arith.andi %202, %204 : vector<1x8x128xi1>
    %c0_i32_47 = arith.constant 0 : i32
    %206 = vector.broadcast %c0_i32_47 : i32 to vector<1x8x128xi32>
    %207 = arith.cmpi eq, %199, %206 : vector<1x8x128xi32>
    %c1_i32 = arith.constant 1 : i32
    %208 = vector.broadcast %c1_i32 : i32 to vector<1x8x128xi32>
    %209 = arith.cmpi eq, %200, %208 : vector<1x8x128xi32>
    %210 = arith.andi %207, %209 : vector<1x8x128xi1>
    %cst_48 = arith.constant 0.000000e+00 : f32
    %211 = vector.broadcast %198 : f32 to vector<1x8x128xf32>
    %212 = vector.broadcast %cst_48 : f32 to vector<1x8x128xf32>
    %213 = arith.select %210, %211, %212 : vector<1x8x128xi1>, vector<1x8x128xf32>
    %214 = vector.broadcast %192 : f32 to vector<1x8x128xf32>
    %215 = arith.select %205, %214, %213 : vector<1x8x128xi1>, vector<1x8x128xf32>
    %c0_49 = arith.constant 0 : index
    %c0_50 = arith.constant 0 : index
    %c0_51 = arith.constant 0 : index
    %216 = vector.load %arg3[%c0_49, %c0_50, %c0_51] : memref<1x8x128xf32, #tpu.memory_space<vmem>>, vector<1x8x128xf32>
    tpu.vector_store %arg3[%c0_49, %c0_50, %c0_51], %215 {strides = array<i32>} : memref<1x8x128xf32, #tpu.memory_space<vmem>>, vector<1x8x128xf32>,
    return
  }
  func.func @transform_0(%arg0: i32) -> (i32, i32, i32) {
    %c0_i32 = arith.constant 0 : i32
    %c0_i32_0 = arith.constant 0 : i32
    %c0_i32_1 = arith.constant 0 : i32
    return %arg0, %c0_i32, %c0_i32_0 : i32, i32, i32
  }
  func.func @transform_1(%arg0: i32) -> (i32, i32, i32) {
    %c0_i32 = arith.constant 0 : i32
    %c0_i32_0 = arith.constant 0 : i32
    %c0_i32_1 = arith.constant 0 : i32
    return %arg0, %c0_i32, %c0_i32_0 : i32, i32, i32
  }
  func.func @transform_2(%arg0: i32) -> (i32, i32, i32) {
    %c0_i32 = arith.constant 0 : i32
    %c0_i32_0 = arith.constant 0 : i32
    %c0_i32_1 = arith.constant 0 : i32
    return %arg0, %c0_i32, %c0_i32_0 : i32, i32, i32
  }
}

</mosaic_0001>

<llo_original>
// kernel: tpu_custom_call.1
$region0: #{tpu_custom_call.1}
  #allocation0 [shape = 'u32[]', space=smem, size = 0x4, offset = 0x4, fixed_abs, tag = 'smem constant byte address 0x4 - core index']
  #allocation1 [shape = 'u32[72,128]{1,0:T(1,128)}', space=vmem, size = 0x9000, scoped, tag = 'internal scratch']
  %s0 = inlined_call_operand.vmem [shape: f32[3,16,8], index: 0, kind: input, shape index: {}]
  %s1 = inlined_call_operand.vmem [shape: f32[3,6,8], index: 1, kind: input, shape index: {}]
  %s2 = inlined_call_operand.hbm [shape: f32[2,8,128], index: 2, kind: output, shape index: {}]
  %s3 = sld [smem:[#allocation0]]
  $region41: #{tpu_custom_call.1} parent=0
    _
  %s5 = ssub.s32 1, %s3
  %s6 = scalar_select 0, %s5, %s3
  $region1: #{tpu_custom_call.1} parent=0
    #allocation2 [shape = 'u8[8192]{0}', space=vmem, size = 0x2000, scoped, tag = 'output window, operand 0']
    #allocation3 [shape = 's32[2]{0}', space=sflag, size = 0x8, scoped, tag = 'scoped memory for tpu_custom_call.1']
    %7 = vsyncpa [#allocation3], 0
    %s8 = scalar_lea.sflag [#allocation3], 1
    %9 = vsyncpa %s8, 0
    loop: start=0, step=1, limit=4
    $region2: #{tpu_custom_call.1} parent=1 // loop_pre_header
      _
    $region3: #{tpu_custom_call.1} parent=1 // loop_header
      %s11 = sphi 0, %s15
      %p12 = scmp.ge.s32.totalorder %s11, 4
      %s21 = sphi 0, %s23
      %s24 = sphi 0, %s21
      %s25 = sphi 0, %s24
      %s41 = sphi 0, %s25
      %s47 = sphi 0, %s49
      %s50 = sphi 0, %s47
      %s51 = sphi 0, %s50
      %s67 = sphi 0, %s51
      %s73 = sphi 0, %s75
      %s76 = sphi 0, %s73
      %s77 = sphi 0, %s76
      %s93 = sphi 0, %s77
    $region4: #{tpu_custom_call.1} parent=1 // loop_header_branch
      %14 = sbr.rel (%p12) target = $region8
    $region5: #{tpu_custom_call.1} parent=1 // loop_body
      %s16 = ssub.s32 %s11, 1
      %s17 = ssub.s32 %s11, 2
      %s18 = sadd.s32 %s11, 1
      %s19 = ssub.s32 %s11, %s18
      %p20 = scmp.eq.s32.totalorder %s19, 0
      %s22 = sadd.s32 %s21, 1
      %s23 = scalar_select %p20, %s21, %s22
      %p26 = pneg %p20
      %p27 = scmp.eq.s32.totalorder %s11, 1
      %p28 = por %p26, %p27
      %p29 = scmp.ne.s32.totalorder %s21, %s24
      %p30 = scmp.eq.s32.totalorder %s11, 0
      %p31 = por %p29, %p30
      %p32 = scmp.ne.s32.totalorder %s21, %s24
      %p33 = scmp.eq.s32.totalorder %s16, 1
      %p34 = por %p32, %p33
      %p35 = scmp.ne.s32.totalorder %s24, %s25
      %p36 = scmp.eq.s32.totalorder %s16, 0
      %p37 = por %p35, %p36
      %p38 = scmp.ne.s32.totalorder %s24, %s25
      %p39 = scmp.eq.s32.totalorder %s17, 1
      %p40 = por %p38, %p39
      %p42 = scmp.ne.s32.totalorder %s25, %s41
      %p43 = scmp.eq.s32.totalorder %s17, 0
      %p44 = por %p42, %p43
      %s45 = ssub.s32 %s11, %s18
      %p46 = scmp.eq.s32.totalorder %s45, 0
      %s48 = sadd.s32 %s47, 1
      %s49 = scalar_select %p46, %s47, %s48
      %p52 = pneg %p46
      %p53 = scmp.eq.s32.totalorder %s11, 1
      %p54 = por %p52, %p53
      %p55 = scmp.ne.s32.totalorder %s47, %s50
      %p56 = scmp.eq.s32.totalorder %s11, 0
      %p57 = por %p55, %p56
      %p58 = scmp.ne.s32.totalorder %s47, %s50
      %p59 = scmp.eq.s32.totalorder %s16, 1
      %p60 = por %p58, %p59
      %p61 = scmp.ne.s32.totalorder %s50, %s51
      %p62 = scmp.eq.s32.totalorder %s16, 0
      %p63 = por %p61, %p62
      %p64 = scmp.ne.s32.totalorder %s50, %s51
      %p65 = scmp.eq.s32.totalorder %s17, 1
      %p66 = por %p64, %p65
      %p68 = scmp.ne.s32.totalorder %s51, %s67
      %p69 = scmp.eq.s32.totalorder %s17, 0
      %p70 = por %p68, %p69
      %s71 = ssub.s32 %s11, %s18
      %p72 = scmp.eq.s32.totalorder %s71, 0
      %s74 = sadd.s32 %s73, 1
      %s75 = scalar_select %p72, %s73, %s74
      %p78 = pneg %p72
      %p79 = scmp.eq.s32.totalorder %s11, 1
      %p80 = por %p78, %p79
      %p81 = scmp.ne.s32.totalorder %s73, %s76
      %p82 = scmp.eq.s32.totalorder %s11, 0
      %p83 = por %p81, %p82
      %p84 = scmp.ne.s32.totalorder %s73, %s76
      %p85 = scmp.eq.s32.totalorder %s16, 1
      %p86 = por %p84, %p85
      %p87 = scmp.ne.s32.totalorder %s76, %s77
      %p88 = scmp.eq.s32.totalorder %s16, 0
      %p89 = por %p87, %p88
      %p90 = scmp.ne.s32.totalorder %s76, %s77
      %p91 = scmp.eq.s32.totalorder %s17, 1
      %p92 = por %p90, %p91
      %p94 = scmp.ne.s32.totalorder %s77, %s93
      %p95 = scmp.eq.s32.totalorder %s17, 0
      %p96 = por %p94, %p95
      %p97 = scmp.le.s32.totalorder 1, %s11
      %p98 = scmp.lt.s32.totalorder %s11, 3
      %p99 = pnand %p97, %p98
      %p100 = pneg %p99
      // Predicated region
      $region9: #{tpu_custom_call.1} parent=5 // pred_check
        _
      $region10: #{tpu_custom_call.1} parent=5 // pred_check_branch
        %102 = sbr.rel (%p99) target = $region12
      $region11: #{tpu_custom_call.1} parent=5 // pred_region
        %s103 = ssub.s32 %s11, 1
      $region12: #{tpu_custom_call.1} parent=5 // pred_fallthru
        _
      %p104 = scmp.lt.s32.totalorder %s11, 2
      // Predicated region
      $region13: #{tpu_custom_call.1} parent=5 // pred_check
        %p105 = pneg %p104
      $region14: #{tpu_custom_call.1} parent=5 // pred_check_branch
        %107 = sbr.rel (%p105) target = $region16
      $region15: #{tpu_custom_call.1} parent=5 // pred_region
        // Predicated region
        $region17: #{tpu_custom_call.1} parent=15 // pred_check
          %p108 = pneg %p31
        $region18: #{tpu_custom_call.1} parent=15 // pred_check_branch
          %110 = sbr.rel (%p108) target = $region20
        $region19: #{tpu_custom_call.1} parent=15 // pred_region
          %s111 = smul.u32 2, %s11
          %s112 = ssub.s32 3, %s111
          %p113 = scmp.lt.s32.totalorder %s112, 2
          %s114 = scalar_select %p113, %s112, 2
          %s115 = smul.u32 8, %s114
          %s116 = smul.u32 %s115, 2
          %p117 = scmp.lt.s32.totalorder %s111, 2
          %s118 = scalar_select %p117, %s111, 2
          %s119 = smul.addr %s118, 2
          %s120 = smul.addr %s119, 8
          %s121 = scalar_lea.vmem %s0, %s120
          %s122 = smul.u32 2, %s11
          %s123 = ssub.s32 3, %s122
          %p124 = scmp.lt.s32.totalorder %s123, 2
          %s125 = scalar_select %p124, %s123, 2
          %s126 = smul.u32 8, %s125
          %s127 = smul.u32 %s126, 2
        $region20: #{tpu_custom_call.1} parent=15 // pred_fallthru
          _
        // Predicated region
        $region21: #{tpu_custom_call.1} parent=15 // pred_check
          %p128 = pneg %p57
        $region22: #{tpu_custom_call.1} parent=15 // pred_check_branch
          %130 = sbr.rel (%p128) target = $region24
        $region23: #{tpu_custom_call.1} parent=15 // pred_region
          %s131 = smul.u32 2, %s11
          %s132 = ssub.s32 3, %s131
          %p133 = scmp.lt.s32.totalorder %s132, 2
          %s134 = scalar_select %p133, %s132, 2
          %s135 = smul.u32 8, %s134
          %p136 = scmp.lt.s32.totalorder %s131, 2
          %s137 = scalar_select %p136, %s131, 2
          %s138 = smul.addr %s137, 8
          %s139 = scalar_lea.vmem %s1, %s138
          %s140 = smul.u32 2, %s11
          %s141 = ssub.s32 3, %s140
          %p142 = scmp.lt.s32.totalorder %s141, 2
          %s143 = scalar_select %p142, %s141, 2
          %s144 = smul.u32 8, %s143
        $region24: #{tpu_custom_call.1} parent=15 // pred_fallthru
          _
      $region16: #{tpu_custom_call.1} parent=5 // pred_fallthru
        _
      %p145 = scmp.le.s32.totalorder 1, %s11
      %p146 = scmp.lt.s32.totalorder %s11, 3
      %p147 = pnand %p145, %p146
      %p148 = pneg %p147
      // Predicated region
      $region25: #{tpu_custom_call.1} parent=5 // pred_check
        _
      $region26: #{tpu_custom_call.1} parent=5 // pred_check_branch
        %150 = sbr.rel (%p147) target = $region28
      $region27: #{tpu_custom_call.1} parent=5 // pred_region
        %s151 = ssub.s32 %s11, 1
        %s152 = smul.u32 2, %s16
        %s153 = ssub.s32 3, %s152
        %p154 = scmp.lt.s32.totalorder %s153, 2
        %s155 = scalar_select %p154, %s153, 2
        %s156 = smul.u32 8, %s155
        %s157 = smul.u32 %s156, 2
        %p158 = scmp.lt.s32.totalorder %s152, 2
        %s159 = scalar_select %p158, %s152, 2
        %s160 = smul.addr %s159, 2
        %s161 = smul.addr %s160, 8
        %s162 = scalar_lea.vmem %s0, %s161
        %p163 = pneg %p37
        %p164 = pneg %p34
        %s165 = smul.u32 2, %s16
        %s166 = ssub.s32 3, %s165
        %p167 = scmp.lt.s32.totalorder %s166, 2
        %s168 = scalar_select %p167, %s166, 2
        %s169 = smul.u32 8, %s168
        %p170 = scmp.lt.s32.totalorder %s165, 2
        %s171 = scalar_select %p170, %s165, 2
        %s172 = smul.addr %s171, 8
        %s173 = scalar_lea.vmem %s1, %s172
        %p174 = pneg %p63
        %p175 = pneg %p60
        %p176 = pneg %p89
        %p177 = pneg %p86
        %s178 = sand.u32 %s76, 1
        %s179 = scalar_lea.sflag [#allocation3], %s178
        %s180 = sand.u32 %s76, 1
        %s181 = smul.addr %s180, 8
        %s182 = scalar_lea.vmem [#allocation2], %s181
        %s183 = smul.u32 2, %s16
        %s184 = ssub.s32 3, %s183
        %p185 = scmp.lt.s32.totalorder %s184, 2
        %s186 = scalar_select %p185, %s184, 2
        %s187 = smul.u32 8, %s186
        %s188 = smul.u32 %s187, 2
        %p189 = scmp.lt.s32.totalorder %s183, 2
        %s190 = scalar_select %p189, %s183, 2
        %s191 = smul.addr %s190, 2
        %s192 = smul.addr %s191, 8
        %s193 = scalar_lea.vmem %s0, %s192
        %s194 = smul.u32 2, %s16
        %s195 = ssub.s32 3, %s194
        %p196 = scmp.lt.s32.totalorder %s195, 2
        %s197 = scalar_select %p196, %s195, 2
        %s198 = smul.u32 8, %s197
        %s199 = smul.u32 %s198, 2
        %s200 = smul.u32 2, %s16
        %s201 = ssub.s32 3, %s200
        %p202 = scmp.lt.s32.totalorder %s201, 2
        %s203 = scalar_select %p202, %s201, 2
        %s204 = smul.u32 8, %s203
        %p205 = scmp.lt.s32.totalorder %s200, 2
        %s206 = scalar_select %p205, %s200, 2
        %s207 = smul.addr %s206, 8
        %s208 = scalar_lea.vmem %s1, %s207
        %s209 = smul.u32 2, %s16
        %s210 = ssub.s32 3, %s209
        %p211 = scmp.lt.s32.totalorder %s210, 2
        %s212 = scalar_select %p211, %s210, 2
        %s213 = smul.u32 8, %s212
        %v215 = vld [vmem:[%s193] sm:$0xff]
        %v216 = vld [vmem:[%s193 + $0x8] sm:$0xff]
        %v217 = vld [vmem:[%s193 + $0x10] sm:$0xff]
        %v218 = vld [vmem:[%s193 + $0x18] sm:$0xff]
        %219 = vxpose.xlu0.b32.start [1/16] %v215, 128
        %220 = vxpose.xlu0.b32.cont [2/16] %v216, 128
        %221 = vxpose.xlu0.b32.cont [3/16] 0.0, 128
        %222 = vxpose.xlu0.b32.cont [4/16] 0.0, 128
        %223 = vxpose.xlu0.b32.cont [5/16] 0.0, 128
        %224 = vxpose.xlu0.b32.cont [6/16] 0.0, 128
        %225 = vxpose.xlu0.b32.cont [7/16] 0.0, 128
        %226 = vxpose.xlu0.b32.cont [8/16] 0.0, 128
        %227 = vxpose.xlu0.b32.cont [9/16] 0.0, 128
        %228 = vxpose.xlu0.b32.cont [10/16] 0.0, 128
        %229 = vxpose.xlu0.b32.cont [11/16] 0.0, 128
        %230 = vxpose.xlu0.b32.cont [12/16] 0.0, 128
        %231 = vxpose.xlu0.b32.cont [13/16] 0.0, 128
        %232 = vxpose.xlu0.b32.cont [14/16] 0.0, 128
        %233 = vxpose.xlu0.b32.cont [15/16] 0.0, 128
        %234 = vxpose.xlu0.b32.end [16/16] 0.0, 128
        %v235 = vpop.trf.xlu0
        %v236 = vpop.trf.xlu0
        %v237 = vpop.trf.xlu0
        %v238 = vpop.trf.xlu0
        %v239 = vpop.trf.xlu0
        %v240 = vpop.trf.xlu0
        %v241 = vpop.trf.xlu0
        %v242 = vpop.trf.xlu0
        %v243 = vpop.trf.xlu0
        %v244 = vpop.trf.xlu0
        %v245 = vpop.trf.xlu0
        %v246 = vpop.trf.xlu0
        %v247 = vpop.trf.xlu0
        %v248 = vpop.trf.xlu0
        %v249 = vpop.trf.xlu0
        %v250 = vpop.trf.xlu0
        %251 = vxpose.xlu0.b32.start [1/16] %v217, 128
        %252 = vxpose.xlu0.b32.cont [2/16] %v218, 128
        %253 = vxpose.xlu0.b32.cont [3/16] 0.0, 128
        %254 = vxpose.xlu0.b32.cont [4/16] 0.0, 128
        %255 = vxpose.xlu0.b32.cont [5/16] 0.0, 128
        %256 = vxpose.xlu0.b32.cont [6/16] 0.0, 128
        %257 = vxpose.xlu0.b32.cont [7/16] 0.0, 128
        %258 = vxpose.xlu0.b32.cont [8/16] 0.0, 128
        %259 = vxpose.xlu0.b32.cont [9/16] 0.0, 128
        %260 = vxpose.xlu0.b32.cont [10/16] 0.0, 128
        %261 = vxpose.xlu0.b32.cont [11/16] 0.0, 128
        %262 = vxpose.xlu0.b32.cont [12/16] 0.0, 128
        %263 = vxpose.xlu0.b32.cont [13/16] 0.0, 128
        %264 = vxpose.xlu0.b32.cont [14/16] 0.0, 128
        %265 = vxpose.xlu0.b32.cont [15/16] 0.0, 128
        %266 = vxpose.xlu0.b32.end [16/16] 0.0, 128
        %v267 = vpop.trf.xlu0
        %v268 = vpop.trf.xlu0
        %v269 = vpop.trf.xlu0
        %v270 = vpop.trf.xlu0
        %v271 = vpop.trf.xlu0
        %v272 = vpop.trf.xlu0
        %v273 = vpop.trf.xlu0
        %v274 = vpop.trf.xlu0
        %v275 = vpop.trf.xlu0
        %v276 = vpop.trf.xlu0
        %v277 = vpop.trf.xlu0
        %v278 = vpop.trf.xlu0
        %v279 = vpop.trf.xlu0
        %v280 = vpop.trf.xlu0
        %v281 = vpop.trf.xlu0
        %v282 = vpop.trf.xlu0
        %v283 = vpack.c.bf16 %v235, %v235
        %v284 = vpack.c.bf16 %v267, %v267
        %v285 = vld [vmem:[%s208] sm:$0x3f]
        %v286 = vld [vmem:[%s208 + $0x8] sm:$0x3f]
        %v287 = vmul.f32 %v285, 4.0
        %v288 = vmul.f32 %v286, 4.0
        %v289 = vcvt.f32.s32.to.zero.pseudo %v287
        %v290 = vcvt.f32.s32.to.zero.pseudo %v288
        %v291 = vmul.u32 %v289, 4
        %v292 = vmul.u32 %v290, 4
        %v293 = vrot.slane %v289, 7
        %v294 = vrot.slane %v290, 7
        %v295 = vadd.s32 %v291, %v293
        %v296 = vadd.s32 %v292, %v294
        %vm297 = vcmp.lt.s32.totalorder %v289, 4
        %vm298 = vcmp.lt.s32.totalorder %v290, 4
        %v299 = vsel %vm297, 1, 0
        %v300 = vsel %vm298, 1, 0
        %v301 = vrot.slane %v299, 1
        %v302 = vrot.slane %v300, 1
        %vm303 = vcmp.ne.s32.totalorder %v301, 0
        %vm304 = vcmp.ne.s32.totalorder %v302, 0
        %vm305 = vmand %vm297, %vm303
        %vm306 = vmand %vm298, %vm304
        %vm307 = vcmp.ge.s32.totalorder %v289, 0
        %vm308 = vcmp.ge.s32.totalorder %v290, 0
        %v309 = vsel %vm307, 1, 0
        %v310 = vsel %vm308, 1, 0
        %v311 = vrot.slane %v309, 1
        %v312 = vrot.slane %v310, 1
        %vm313 = vcmp.ne.s32.totalorder %v311, 0
        %vm314 = vcmp.ne.s32.totalorder %v312, 0
        %vm315 = vmand %vm307, %vm313
        %vm316 = vmand %vm308, %vm314
        %vm317 = vmand %vm305, %vm315
        %vm318 = vmand %vm306, %vm316
        %v319 = vlaneseq
        %v320 = vshrl.u32 %v319, 7
        %v321 = vadd.s32 %v320, 8
        %v322 = vperm.slane %v295, 2
        %v323 = vperm.slane %v296, 2
        %vm324 = vcmp.eq.s32.totalorder %v320, %v322
        %vm325 = vcmp.eq.s32.totalorder %v321, %v322
        %vm326 = vcmp.eq.s32.totalorder %v320, %v323
        %vm327 = vcmp.eq.s32.totalorder %v321, %v323
        %v328 = vsel %vm324, 1, 0
        %v329 = vsel %vm325, 1, 0
        %v330 = vsel %vm326, 1, 0
        %v331 = vsel %vm327, 1, 0
        %v332 = vcvt.s32.f32 %v328
        %v333 = vcvt.s32.f32 %v329
        %v334 = vcvt.s32.f32 %v330
        %v335 = vcvt.s32.f32 %v331
        %v336 = vpack.c.bf16 %v332, %v332
        %v337 = vpack.c.bf16 %v333, %v333
        %v338 = vpack.c.bf16 %v334, %v334
        %v339 = vpack.c.bf16 %v335, %v335
        %v342 = vunpack.c.l.b16 %v336
        %v343 = vunpack.c.l.b16 %v337
        %v344 = vpack.c.b16 %v343, %v342
        %vm346 = vcmask 130048
        %v348 = vsel %vm346, %v283, 0
        %350 = vmatpush.bf16.msra.mxu0 0
        %351 = vmatpush.bf16.msra.mxu0 0
        %352 = vmatpush.bf16.msra.mxu0 0
        %353 = vmatpush.bf16.msra.mxu0 0
        %354 = vmatpush.bf16.msra.mxu0 0
        %355 = vmatpush.bf16.msra.mxu0 0
        %356 = vmatpush.bf16.msra.mxu0 0
        %357 = vmatpush.bf16.msra.mxu0 %v344
        %358 = vmatmul.bf16.gmra.mxu0 %v348
        %v359 = vpop.f32.mrf.mxu0
        %v360 = vadd.f32 0.0, %v359
        %v361 = vpop.f32.mrf.mxu0
        %362 = vdwg.mxu0
        %v365 = vunpack.c.l.b16 %v338
        %v366 = vunpack.c.l.b16 %v339
        %v367 = vpack.c.b16 %v366, %v365
        %v370 = vsel %vm346, %v284, 0
        %372 = vmatpush.bf16.msra.mxu0 0
        %373 = vmatpush.bf16.msra.mxu0 0
        %374 = vmatpush.bf16.msra.mxu0 0
        %375 = vmatpush.bf16.msra.mxu0 0
        %376 = vmatpush.bf16.msra.mxu0 0
        %377 = vmatpush.bf16.msra.mxu0 0
        %378 = vmatpush.bf16.msra.mxu0 0
        %379 = vmatpush.bf16.msra.mxu0 %v367
        %380 = vmatmul.bf16.gmra.mxu0 %v370
        %v381 = vpop.f32.mrf.mxu0
        %v382 = vadd.f32 0.0, %v381
        %v383 = vpop.f32.mrf.mxu0
        %384 = vdwg.mxu0
        %v385 = vcvt.s32.f32 %v289
        %v386 = vcvt.s32.f32 %v290
        %v387 = vsub.f32 %v287, %v385
        %v388 = vsub.f32 %v288, %v386
        %v389 = vxor.u32 %v360, 2147483648
        %v390 = vxor.u32 %v382, 2147483648
        %v391 = vmul.f32 %v389, 1.442695
        %v392 = vpow.pop %v391
        %v393 = vmul.f32 %v390, 1.442695
        %v394 = vpow.pop %v393
        %v395 = vadd.f32 %v392, 1.0
        %v396 = vadd.f32 %v394, 1.0
        %v397 = vrcp.pop %v395
        %v398 = vmul.f32 %v395, %v397
        %v399 = vsub.f32 1.0, %v398
        %v400 = vmul.f32 %v397, %v399
        %v401 = vadd.f32 %v397, %v400
        %vm402 = vweird.f32 %v395
        %vm403 = vweird.f32 %v397
        %vm404 = vmor %vm402, %vm403
        %v405 = vsel %vm404, %v397, %v401
        %v406 = vand.u32 2147483647, %v395
        %vm407 = vcmp.eq.f32.partialorder %v406, 8.507059e+37
        %v408 = vand.u32 %v395, 2147483648
        %v409 = vor.u32 1.1754944e-38, %v408
        %v410 = vsel %vm407, %v409, %v405
        %v411 = vmul.f32 1.0, %v410
        %v412 = vrcp.pop %v396
        %v413 = vmul.f32 %v396, %v412
        %v414 = vsub.f32 1.0, %v413
        %v415 = vmul.f32 %v412, %v414
        %v416 = vadd.f32 %v412, %v415
        %vm417 = vweird.f32 %v396
        %vm418 = vweird.f32 %v412
        %vm419 = vmor %vm417, %vm418
        %v420 = vsel %vm419, %v412, %v416
        %v421 = vand.u32 2147483647, %v396
        %vm422 = vcmp.eq.f32.partialorder %v421, 8.507059e+37
        %v423 = vand.u32 %v396, 2147483648
        %v424 = vor.u32 1.1754944e-38, %v423
        %v425 = vsel %vm422, %v424, %v420
        %v426 = vmul.f32 1.0, %v425
        %v429 = vrot.slane %v387, 1
        %v430 = vrot.slane %v388, 1
        %v433 = vsub.f32 %v411, %v429
        %v434 = vsub.f32 %v426, %v430
        %v435 = vmul.f32 %v433, %v433
        %v436 = vmul.f32 %v434, %v434
        %v439 = vrot.slane %v435, 1
        %v440 = vrot.slane %v436, 1
        %v443 = vadd.f32 %v435, %v439
        %v444 = vadd.f32 %v436, %v440
        %v445 = vmul.f32 %v443, 0.5
        %v446 = vmul.f32 %v444, 0.5
        %v447 = vadd.f32 %v287, 1e-16
        %v448 = vadd.f32 %v288, 1e-16
        %v449 = vlog2.pop %v447
        %v450 = vmul.f32 %v449, 0.6931472
        %v451 = vlog2.pop %v448
        %v452 = vmul.f32 %v451, 0.6931472
        %v455 = vrot.slane %v450, 1
        %v456 = vrot.slane %v452, 1
        %v459 = vsub.f32 %v360, %v455
        %v460 = vsub.f32 %v382, %v456
        %v461 = vmul.f32 %v459, %v459
        %v462 = vmul.f32 %v460, %v460
        %v465 = vrot.slane %v461, 1
        %v466 = vrot.slane %v462, 1
        %v469 = vadd.f32 %v461, %v465
        %v470 = vadd.f32 %v462, %v466
        %v471 = vmul.f32 %v469, 0.5
        %v472 = vmul.f32 %v470, 0.5
        %v473 = vsub.f32 0.0, %v360
        %v474 = vsub.f32 0.0, %v382
        %v475 = vmax.f32 %v473, 0.0
        %v476 = vmax.f32 %v474, 0.0
        %v477 = vand.u32 2147483647, %v473
        %v478 = vand.u32 2147483647, %v474
        %v479 = vsub.f32 0.0, %v477
        %v480 = vsub.f32 0.0, %v478
        %v481 = vmul.f32 %v479, 1.442695
        %v482 = vpow.pop %v481
        %v483 = vmul.f32 %v480, 1.442695
        %v484 = vpow.pop %v483
        %v485 = vadd.f32 %v482, 1.0
        %v486 = vadd.f32 %v484, 1.0
        %v487 = vlog2.pop %v485
        %v488 = vmul.f32 %v487, 0.6931472
        %v489 = vlog2.pop %v486
        %v490 = vmul.f32 %v489, 0.6931472
        %v491 = vadd.f32 %v475, %v488
        %v492 = vadd.f32 %v476, %v490
        %v493 = vmin.f32 %v491, 100.0
        %v494 = vmin.f32 %v492, 100.0
        %v495 = vcvt.f32.s32.to.zero.pseudo %v285
        %v496 = vcvt.f32.s32.to.zero.pseudo %v286
        %v497 = vperm.slane %v495, 0
        %v498 = vperm.slane %v496, 0
        %vm499 = vcmp.eq.s32.totalorder %v320, %v497
        %vm500 = vcmp.eq.s32.totalorder %v320, %v498
        %v501 = vsel %vm499, 1, 0
        %v502 = vsel %vm500, 1, 0
        %v503 = vcvt.s32.f32 %v501
        %v504 = vcvt.s32.f32 %v502
        %vm505 = vcmask 64517
        %v506 = vsel %vm505, %v360, -inf
        %v507 = vrot.slane %v506, 4
        %v508 = vmax.f32 %v506, %v507
        %v509 = vrot.slane %v508, 2
        %v510 = vmax.f32 %v508, %v509
        %v511 = vrot.slane %v510, 1
        %v512 = vmax.f32 %v510, %v511
        %v513 = vsel %vm505, %v382, -inf
        %v514 = vrot.slane %v513, 4
        %v515 = vmax.f32 %v513, %v514
        %v516 = vrot.slane %v515, 2
        %v517 = vmax.f32 %v515, %v516
        %v518 = vrot.slane %v517, 1
        %v519 = vmax.f32 %v517, %v518
        %v520 = vsub.f32 %v360, %v512
        %v521 = vsub.f32 %v382, %v519
        %v522 = vmul.f32 %v520, 1.442695
        %v523 = vpow.pop %v522
        %v524 = vmul.f32 %v521, 1.442695
        %v525 = vpow.pop %v524
        %v528 = vrot.slane %v523, 5
        %v529 = vrot.slane %v525, 5
        %vm532 = vcmask 59392
        %v533 = vsel %vm532, %v528, 0.0
        %v534 = vrot.slane %v533, 4
        %v535 = vadd.f32 %v533, %v534
        %v536 = vrot.slane %v535, 2
        %v537 = vadd.f32 %v535, %v536
        %v538 = vrot.slane %v537, 1
        %v539 = vadd.f32 %v537, %v538
        %v540 = vsel %vm532, %v529, 0.0
        %v541 = vrot.slane %v540, 4
        %v542 = vadd.f32 %v540, %v541
        %v543 = vrot.slane %v542, 2
        %v544 = vadd.f32 %v542, %v543
        %v545 = vrot.slane %v544, 1
        %v546 = vadd.f32 %v544, %v545
        %v547 = vlog2.pop %v539
        %v548 = vmul.f32 %v547, 0.6931472
        %v549 = vlog2.pop %v546
        %v550 = vmul.f32 %v549, 0.6931472
        %v551 = vadd.f32 %v512, %v548
        %v552 = vadd.f32 %v519, %v550
        %v555 = vrot.slane %v360, 5
        %v556 = vrot.slane %v382, 5
        %v559 = vmul.f32 %v503, %v555
        %v560 = vmul.f32 %v504, %v556
        %v561 = vsel %vm532, %v559, 0.0
        %v562 = vrot.slane %v561, 4
        %v563 = vadd.f32 %v561, %v562
        %v564 = vrot.slane %v563, 2
        %v565 = vadd.f32 %v563, %v564
        %v566 = vrot.slane %v565, 1
        %v567 = vadd.f32 %v565, %v566
        %v568 = vsel %vm532, %v560, 0.0
        %v569 = vrot.slane %v568, 4
        %v570 = vadd.f32 %v568, %v569
        %v571 = vrot.slane %v570, 2
        %v572 = vadd.f32 %v570, %v571
        %v573 = vrot.slane %v572, 1
        %v574 = vadd.f32 %v572, %v573
        %v575 = vsub.f32 %v551, %v567
        %v576 = vsub.f32 %v552, %v574
        %v577 = vsel %vm305, 1, 0
        %v578 = vsel %vm306, 1, 0
        %v579 = vcvt.s32.f32 %v577
        %v580 = vcvt.s32.f32 %v578
        %v583 = vrot.slane %v579, 4
        %v584 = vrot.slane %v580, 4
        %v587 = vmul.f32 %v285, %v583
        %v588 = vmul.f32 %v286, %v584
        %v591 = vrot.slane %v471, 2
        %v592 = vrot.slane %v472, 2
        %v595 = vadd.f32 %v445, %v591
        %v596 = vadd.f32 %v446, %v592
        %v597 = vmul.f32 %v595, 5.0
        %v598 = vmul.f32 %v596, 5.0
        %v601 = vrot.slane %v493, 4
        %v602 = vrot.slane %v494, 4
        %v605 = vadd.f32 %v597, %v601
        %v606 = vadd.f32 %v598, %v602
        %v607 = vadd.f32 %v605, %v575
        %v608 = vadd.f32 %v606, %v576
        %v611 = vrot.slane %v587, 5
        %v612 = vrot.slane %v588, 5
        %v615 = vmul.f32 %v607, %v611
        %v616 = vmul.f32 %v608, %v612
        %v619 = vrot.slane %v616, 7
        %vm620 = vcmask 1041409
        %v621 = vsel %vm620, %v619, %v615
        %vm623 = vcmask 58368
        %v624 = vsel %vm623, %v621, 0.0
        %625 = vadd.xlane.f32.xlu0 %v624
        %v626 = vpop.xlane.xlu0 %625
        %v627 = vrot.slane %v588, 7
        %vm628 = vcmask 1046534
        %v629 = vsel %vm628, %v627, %v587
        %vm631 = vcmask 63493
        %v632 = vsel %vm631, %v629, 0.0
        %633 = vadd.xlane.f32.xlu0 %v632
        %v634 = vpop.xlane.xlu0 %633
        %v635 = vsel %vm317, 1, 0
        %v636 = vsel %vm318, 1, 0
        %v637 = vcvt.s32.f32 %v635
        %v638 = vcvt.s32.f32 %v636
        %v641 = vrot.slane %v637, 4
        %v642 = vrot.slane %v638, 4
        %v645 = vmul.f32 %v285, %v641
        %v646 = vmul.f32 %v286, %v642
        %v647 = vpack.c.bf16 %v645, %v645
        %v648 = vpack.c.bf16 %v646, %v646
        %v650 = vunpack.c.l.b16 %v647
        %v651 = vpack.c.b16 %v650, %v650
        %v653 = vshrl.u32 %v651, 16
        %v655 = vrot.slane %v653, 2
        %vm656 = vcmask 64512
        %v658 = vsel %vm656, %v655, 0
        %v661 = vsel %vm656, %v344, 0
        %663 = vmatpush.bf16.xpose.msra.mxu0 0
        %664 = vmatpush.bf16.xpose.msra.mxu0 0
        %665 = vmatpush.bf16.xpose.msra.mxu0 0
        %666 = vmatpush.bf16.xpose.msra.mxu0 0
        %667 = vmatpush.bf16.xpose.msra.mxu0 0
        %668 = vmatpush.bf16.xpose.msra.mxu0 0
        %669 = vmatpush.bf16.xpose.msra.mxu0 0
        %670 = vmatpush.bf16.xpose.msra.mxu0 %v661
        %671 = vmatmul.bf16.gmra.mxu0 %v658
        %v672 = vpop.f32.mrf.mxu0
        %v673 = vadd.f32 0.0, %v672
        %v674 = vpop.f32.mrf.mxu0
        %675 = vdwg.mxu0
        %v677 = vunpack.c.l.b16 %v648
        %v678 = vpack.c.b16 %v677, %v677
        %v680 = vshrl.u32 %v678, 16
        %v682 = vrot.slane %v680, 2
        %v684 = vsel %vm656, %v682, 0
        %v687 = vsel %vm656, %v367, 0
        %689 = vmatpush.bf16.xpose.msra.mxu0 0
        %690 = vmatpush.bf16.xpose.msra.mxu0 0
        %691 = vmatpush.bf16.xpose.msra.mxu0 0
        %692 = vmatpush.bf16.xpose.msra.mxu0 0
        %693 = vmatpush.bf16.xpose.msra.mxu0 0
        %694 = vmatpush.bf16.xpose.msra.mxu0 0
        %695 = vmatpush.bf16.xpose.msra.mxu0 0
        %696 = vmatpush.bf16.xpose.msra.mxu0 %v687
        %697 = vmatmul.bf16.gmra.mxu0 %v684
        %v698 = vpop.f32.mrf.mxu0
        %v699 = vadd.f32 0.0, %v698
        %v700 = vpop.f32.mrf.mxu0
        %701 = vdwg.mxu0
        %vm702 = vcmp.le.f32.partialorder %v673, 0.0
        %vm703 = vcmp.le.f32.partialorder %v699, 0.0
        %v704 = vsel %vm702, 1, 0
        %v705 = vsel %vm703, 1, 0
        %v706 = vcvt.s32.f32 %v704
        %v707 = vcvt.s32.f32 %v705
        %v710 = vrot.slane %v707, 7
        %v711 = vsel %vm620, %v710, %v706
        %vm713 = vcmask 123904
        %v714 = vsel %vm713, %v711, 0.0
        %715 = vadd.xlane.f32.xlu0 %v714
        %v716 = vpop.xlane.xlu0 %715
        %v717 = vmax.f32 %v235, 0.0
        %v718 = vmax.f32 %v267, 0.0
        %v719 = vand.u32 2147483647, %v235
        %v720 = vand.u32 2147483647, %v267
        %v721 = vsub.f32 0.0, %v719
        %v722 = vsub.f32 0.0, %v720
        %v723 = vmul.f32 %v721, 1.442695
        %v724 = vpow.pop %v723
        %v725 = vmul.f32 %v722, 1.442695
        %v726 = vpow.pop %v725
        %v727 = vadd.f32 %v724, 1.0
        %v728 = vadd.f32 %v726, 1.0
        %v729 = vlog2.pop %v727
        %v730 = vmul.f32 %v729, 0.6931472
        %v731 = vlog2.pop %v728
        %v732 = vmul.f32 %v731, 0.6931472
        %v733 = vadd.f32 %v717, %v730
        %v734 = vadd.f32 %v718, %v732
        %v735 = vmin.f32 %v733, 100.0
        %v736 = vmin.f32 %v734, 100.0
        %v739 = vrot.slane %v735, 4
        %v740 = vrot.slane %v736, 4
        %v743 = vmul.f32 %v706, %v739
        %v744 = vmul.f32 %v707, %v740
        %v747 = vrot.slane %v744, 7
        %v748 = vsel %vm620, %v747, %v743
        %v750 = vsel %vm713, %v748, 0.0
        %751 = vadd.xlane.f32.xlu0 %v750
        %v752 = vpop.xlane.xlu0 %751
        %vm753 = vcmp.gt.f32.partialorder %v716, 0.0
        %v754 = vmax.f32 %v716, 1.0
        %v755 = vrcp.pop %v754
        %v756 = vmul.f32 %v754, %v755
        %v757 = vsub.f32 1.0, %v756
        %v758 = vmul.f32 %v755, %v757
        %v759 = vadd.f32 %v755, %v758
        %vm760 = vweird.f32 %v754
        %vm761 = vweird.f32 %v755
        %vm762 = vmor %vm760, %vm761
        %v763 = vsel %vm762, %v755, %v759
        %v764 = vand.u32 2147483647, %v754
        %vm765 = vcmp.eq.f32.partialorder %v764, 8.507059e+37
        %v766 = vand.u32 %v754, 2147483648
        %v767 = vor.u32 1.1754944e-38, %v766
        %v768 = vsel %vm765, %v767, %v763
        %v769 = vmul.f32 %v752, %v768
        %v770 = vsel %vm753, %v769, 0.0
        %v771 = vmul.f32 %v770, 0.5
        %v772 = vadd.f32 %v626, %v771
        %s773 = smul.u32 %s16, 2
        %v774 = vstv %s773
        %v775 = vadd.s32 %v774, %v320
        %vm776 = vcmp.lt.s32.totalorder %v775, 3
        %v777 = vsel %vm776, %v772, 0.0
        %vm778 = vcmask 1024
        %v779 = vsel %vm778, %v777, 0.0
        %780 = vadd.xlane.f32.xlu0 %v779
        %v781 = vpop.xlane.xlu0 %780
        %v782 = vrot.slane %v781, 4
        %v783 = vadd.f32 %v781, %v782
        %v784 = vrot.slane %v783, 2
        %v785 = vadd.f32 %v783, %v784
        %v786 = vrot.slane %v785, 1
        %v787 = vadd.f32 %v785, %v786
        %s788 = vtos %v787
        %v790 = vrot.slane %v634, 5
        %v792 = vsel %vm776, %v790, 0.0
        %v793 = vsel %vm778, %v792, 0.0
        %794 = vadd.xlane.f32.xlu0 %v793
        %v795 = vpop.xlane.xlu0 %794
        %v796 = vrot.slane %v795, 4
        %v797 = vadd.f32 %v795, %v796
        %v798 = vrot.slane %v797, 2
        %v799 = vadd.f32 %v797, %v798
        %v800 = vrot.slane %v799, 1
        %v801 = vadd.f32 %v799, %v800
        %s802 = vtos %v801
        %v803 = vlaneseq
        %v804 = vand.u32 %v803, 127
        %vm805 = vcmp.eq.s32.totalorder %v320, 0
        %vm806 = vcmp.eq.s32.totalorder %v804, 0
        %vm807 = vmand %vm805, %vm806
        %vm808 = vcmp.eq.s32.totalorder %v804, 1
        %vm809 = vmand %vm805, %vm808
        %v810 = vstv %s802
        %v811 = vsel %vm809, %v810, 0.0
        %v812 = vstv %s788
        %v813 = vsel %vm807, %v812, %v811
        %814 = vst [vmem:[%s182] sm:$0xff] %v813
        %s815 = sand.u32 %s76, 1
        %s816 = scalar_lea.sflag [#allocation3], %s815
        %s817 = sand.u32 %s76, 1
        %s818 = smul.addr %s817, 8
        %s819 = scalar_lea.vmem [#allocation2], %s818
        // Predicated region
        $region29: #{tpu_custom_call.1} parent=27 // pred_check
          %p820 = pneg %p86
        $region30: #{tpu_custom_call.1} parent=27 // pred_check_branch
          %822 = sbr.rel (%p820) target = $region32
        $region31: #{tpu_custom_call.1} parent=27 // pred_region
          %824 = vsyncadd %s816, 0
          %s825 = smul.addr %s16, 8
          %s826 = scalar_lea.hbm %s2, %s825
          %s828 = sshll.u32 %s819, 4
          %s829 = int_to_ptr.vmem [resolvable:$true] %s828
          %s830 = sshll.u32 %s826, 4
          %s831 = int_to_ptr.hbm [resolvable:$true] %s830
          %833 = dma.vmem_to_hbm [thread:$0]  %s829, 128, %s831, %s816
        $region32: #{tpu_custom_call.1} parent=27 // pred_fallthru
          _
      $region28: #{tpu_custom_call.1} parent=5 // pred_fallthru
        _
      %p834 = scmp.le.s32.totalorder 2, %s11
      // Predicated region
      $region33: #{tpu_custom_call.1} parent=5 // pred_check
        %p835 = pneg %p834
      $region34: #{tpu_custom_call.1} parent=5 // pred_check_branch
        %837 = sbr.rel (%p835) target = $region36
      $region35: #{tpu_custom_call.1} parent=5 // pred_region
        %s838 = ssub.s32 %s11, 2
        // Predicated region
        $region37: #{tpu_custom_call.1} parent=35 // pred_check
          %p839 = pneg %p92
        $region38: #{tpu_custom_call.1} parent=35 // pred_check_branch
          %841 = sbr.rel (%p839) target = $region40
        $region39: #{tpu_custom_call.1} parent=35 // pred_region
          %s842 = sand.u32 %s77, 1
          %s843 = scalar_lea.sflag [#allocation3], %s842
          %s844 = sand.u32 %s77, 1
          %s845 = smul.addr %s844, 8
          %s846 = scalar_lea.vmem [#allocation2], %s845
          %848 = dma.done %s843, 128
        $region40: #{tpu_custom_call.1} parent=35 // pred_fallthru
          _
      $region36: #{tpu_custom_call.1} parent=5 // pred_fallthru
        _
    $region6: #{tpu_custom_call.1} parent=1 // loop_footer
      %s15 = sadd.s32 1, %s11
    $region7: #{tpu_custom_call.1} parent=1 // loop_footer_branch
      %10 = sbr.rel target = $region3
    $region8: #{tpu_custom_call.1} parent=1 // loop_exit
      _
    %849 = vsyncpa [#allocation3], 1
    %s850 = scalar_lea.sflag [#allocation3], 1
    %851 = vsyncpa %s850, 1

</llo_original>
